<compile_context>
chip_gen: v7x
topology: tpu7x:2x2x1
jax: 0.10.0
libtpu: 0.0.40
codegen_flags: <defaults>
</compile_context>

<pallas_src>
import functools

import jax
import jax.numpy as jnp
from jax.experimental import pallas as pl
from jax.experimental.pallas import tpu as pltpu

BN_EPS = 1e-5


def _round_up(x, m):
    return (x + m - 1) // m * m


# ---------------------------------------------------------------------------
# Pass 1: per-feature sum and sum-of-squares of h = x @ W1 + b1 over all rows.
# ---------------------------------------------------------------------------
def _stats_kernel(x_ref, w1_ref, b1_ref, stats_ref, *, tile_m, m_valid, m_padded):
    @pl.when(pl.program_id(0) == 0)
    def _():
        stats_ref[...] = jnp.zeros_like(stats_ref)

    # bf16 x bf16 -> f32 accumulate on the MXU; bias add in f32.
    h = jnp.dot(x_ref[...], w1_ref[...], preferred_element_type=jnp.float32)
    h = h + b1_ref[...]

    if m_padded != m_valid:
        # Mask out zero-padded rows so they do not pollute the batch statistics.
        row = pl.program_id(0) * tile_m + jax.lax.broadcasted_iota(
            jnp.int32, (tile_m, 1), 0)
        h = jnp.where(row < m_valid, h, 0.0)

    # Column sums via ones-matmul: rides the MXU instead of cross-sublane XLU reduces.
    ones = jnp.ones((1, tile_m), jnp.float32)
    s = jnp.dot(ones, h, preferred_element_type=jnp.float32)
    sq = jnp.dot(ones, h * h, preferred_element_type=jnp.float32)
    stats_ref[...] += jnp.concatenate([s, sq], axis=0)  # row 0: sum, row 1: sum(h^2)


# ---------------------------------------------------------------------------
# Pass 2: fused [W1 | fc_W] matmul, BN apply (precomputed scale/shift) + ReLU,
#         second matmul, residual add.
# ---------------------------------------------------------------------------
def _apply_kernel(x_ref, wf_ref, bf_ref, scale_ref, shift_ref, w2_ref, b2_ref,
                  o_ref, *, h_cols):
    # One MXU pass over the x tile produces both the MLP hidden and the fc branch.
    r = jnp.dot(x_ref[...], wf_ref[...], preferred_element_type=jnp.float32)
    r = r + bf_ref[...]
    h = r[:, :h_cols]          # hidden columns (h_cols is a multiple of 128)
    fc = r[:, h_cols:]         # fc-branch columns

    # BatchNorm (folded into scale/shift) + ReLU: one FMA + max per element.
    h = jnp.maximum(h * scale_ref[...] + shift_ref[...], 0.0)

    mlp = jnp.dot(h.astype(w2_ref.dtype), w2_ref[...],
                  preferred_element_type=jnp.float32)
    o_ref[...] = (mlp + b2_ref[...] + fc).astype(o_ref.dtype)


@functools.partial(jax.jit, static_argnames=("compute_dtype",))
def encoder_image_aggr(images, params, compute_dtype=jnp.bfloat16):
    """images: (B, N, img_dim) -> (B, N, embed_size), float32."""
    B, N, D = images.shape
    E = params["fc_w"].shape[1]
    H = params["mlp_w1"].shape[1]
    M = B * N

    # --- static geometry (all Python ints) ------------------------------------
    D_p = _round_up(D, 128)
    H_p = _round_up(H, 128)
    E_p = _round_up(E, 128)
    TILE_M = min(512, _round_up(M, 8))       # 512 keeps v7x (64 MiB VMEM) happy
    M_p = _round_up(M, TILE_M)
    grid = (M_p // TILE_M,)

    itemsize = jnp.dtype(compute_dtype).itemsize
    est_bytes = (
        D_p * (H_p + E_p) * itemsize         # fused first-stage weight (resident)
        + H_p * E_p * itemsize               # second-stage weight (resident)
        + 2 * TILE_M * D_p * itemsize        # double-buffered x tiles
        + 2 * TILE_M * E_p * 4               # double-buffered output tiles
        + 3 * TILE_M * (H_p + E_p) * 4       # f32 intermediates in the body
    )
    vmem_limit = int(min(max(3 * est_bytes // 2, 32 * 1024 * 1024),
                         56 * 1024 * 1024))

    # --- pad / cast operands once in the wrapper -------------------------------
    def pad2(a, rows, cols):
        a = a.astype(jnp.float32)
        return jnp.pad(a, ((0, rows - a.shape[0]), (0, cols - a.shape[1])))

    x2 = images.reshape(M, D).astype(jnp.float32)
    if (M_p, D_p) != (M, D):
        x2 = jnp.pad(x2, ((0, M_p - M), (0, D_p - D)))
    xc = x2.astype(compute_dtype)

    fc_w = pad2(params["fc_w"], D_p, E_p)
    fc_b = pad2(params["fc_b"], 1, E_p)
    w1 = pad2(params["mlp_w1"], D_p, H_p)
    b1 = pad2(params["mlp_b1"], 1, H_p)
    gamma = pad2(params["bn_gamma"], 1, H_p)   # padded cols get gamma=0 -> scale=0
    beta = pad2(params["bn_beta"], 1, H_p)
    w2 = pad2(params["mlp_w2"], H_p, E_p)
    b2 = pad2(params["mlp_b2"], 1, E_p)

    w1c = w1.astype(compute_dtype)
    w2c = w2.astype(compute_dtype)
    wf = jnp.concatenate([w1, fc_w], axis=1).astype(compute_dtype)  # (D_p, H_p+E_p)
    bf = jnp.concatenate([b1, fc_b], axis=1)                        # f32

    # --- pass 1: BN statistics over all M rows ---------------------------------
    stats = pl.pallas_call(
        functools.partial(_stats_kernel, tile_m=TILE_M, m_valid=M, m_padded=M_p),
        out_shape=jax.ShapeDtypeStruct((2, H_p), jnp.float32),
        grid=grid,
        in_specs=[
            pl.BlockSpec((TILE_M, D_p), lambda i: (i, 0)),   # streamed x tile
            pl.BlockSpec((D_p, H_p), lambda i: (0, 0)),      # resident W1
            pl.BlockSpec((1, H_p), lambda i: (0, 0)),        # resident b1
        ],
        out_specs=pl.BlockSpec((2, H_p), lambda i: (0, 0)),  # resident accumulator
        compiler_params=pltpu.CompilerParams(
            dimension_semantics=("arbitrary",),
            vmem_limit_bytes=vmem_limit,
        ),
    )(xc, w1c, b1)

    # Fold BN into a single scale/shift pair (tiny (1, H_p) XLA ops, done once).
    mean = stats[0:1, :] / M
    var = jnp.maximum(stats[1:2, :] / M - mean * mean, 0.0)  # biased, as in PyTorch
    scale = gamma * jax.lax.rsqrt(var + BN_EPS)
    shift = beta - mean * scale

    # --- pass 2: apply (row-parallel, megacore-shardable) ----------------------
    out = pl.pallas_call(
        functools.partial(_apply_kernel, h_cols=H_p),
        out_shape=jax.ShapeDtypeStruct((M_p, E_p), jnp.float32),
        grid=grid,
        in_specs=[
            pl.BlockSpec((TILE_M, D_p), lambda i: (i, 0)),        # streamed x tile
            pl.BlockSpec((D_p, H_p + E_p), lambda i: (0, 0)),     # resident [W1 | fc_W]
            pl.BlockSpec((1, H_p + E_p), lambda i: (0, 0)),       # resident [b1 | fc_b]
            pl.BlockSpec((1, H_p), lambda i: (0, 0)),             # BN scale
            pl.BlockSpec((1, H_p), lambda i: (0, 0)),             # BN shift
            pl.BlockSpec((H_p, E_p), lambda i: (0, 0)),           # resident W2
            pl.BlockSpec((1, E_p), lambda i: (0, 0)),             # resident b2
        ],
        out_specs=pl.BlockSpec((TILE_M, E_p), lambda i: (i, 0)),
        compiler_params=pltpu.CompilerParams(
            dimension_semantics=("parallel",),
            vmem_limit_bytes=vmem_limit,
        ),
    )(xc, wf, bf, scale, shift, w2c, b2)

    return out[:M, :E].reshape(B, N, E)


# ---------------------------------------------------------------------------
# Parameter init mirroring the module's __init__ / init_weights().
# ---------------------------------------------------------------------------
def init_params(key, img_dim, embed_size):
    hidden = embed_size // 2
    k_fc, k_w1, k_b1, k_w2, k_b2 = jax.random.split(key, 5)

    # fc: Xavier-uniform as in init_weights(), bias = 0.
    r = jnp.sqrt(6.0) / jnp.sqrt(img_dim + embed_size)
    fc_w = jax.random.uniform(k_fc, (img_dim, embed_size), jnp.float32, -r, r)
    fc_b = jnp.zeros((1, embed_size), jnp.float32)

    # MLP linear layers: PyTorch default uniform(-1/sqrt(fan_in), 1/sqrt(fan_in)).
    r1 = 1.0 / jnp.sqrt(jnp.float32(img_dim))
    mlp_w1 = jax.random.uniform(k_w1, (img_dim, hidden), jnp.float32, -r1, r1)
    mlp_b1 = jax.random.uniform(k_b1, (1, hidden), jnp.float32, -r1, r1)
    r2 = 1.0 / jnp.sqrt(jnp.float32(hidden))
    mlp_w2 = jax.random.uniform(k_w2, (hidden, embed_size), jnp.float32, -r2, r2)
    mlp_b2 = jax.random.uniform(k_b2, (1, embed_size), jnp.float32, -r2, r2)

    # BatchNorm1d affine params (gamma=1, beta=0 at init).
    bn_gamma = jnp.ones((1, hidden), jnp.float32)
    bn_beta = jnp.zeros((1, hidden), jnp.float32)
    # TODO(synk): BatchNorm1d running_mean/running_var updates (training-time side
    # effect) are not produced; the kernel normalizes with batch statistics only.

    return dict(fc_w=fc_w, fc_b=fc_b,
                mlp_w1=mlp_w1, mlp_b1=mlp_b1,
                bn_gamma=bn_gamma, bn_beta=bn_beta,
                mlp_w2=mlp_w2, mlp_b2=mlp_b2)


def reference(images, params):
    """Pure-JAX f32 reference for a sanity check."""
    B, N, D = images.shape
    x = images.reshape(B * N, D)
    fc = x @ params["fc_w"] + params["fc_b"]
    h = x @ params["mlp_w1"] + params["mlp_b1"]
    mean = jnp.mean(h, axis=0, keepdims=True)
    var = jnp.mean((h - mean) ** 2, axis=0, keepdims=True)
    h = (h - mean) / jnp.sqrt(var + BN_EPS) * params["bn_gamma"] + params["bn_beta"]
    h = jnp.maximum(h, 0.0)
    mlp = h @ params["mlp_w2"] + params["mlp_b2"]
    return (mlp + fc).reshape(B, N, -1)


if __name__ == "__main__":
    B, N, IMG_DIM, EMBED = 2, 8, 32, 32

    key = jax.random.PRNGKey(0)
    k_img, k_par = jax.random.split(key)
    images = jax.random.normal(k_img, (B, N, IMG_DIM), jnp.float32)
    params = init_params(k_par, IMG_DIM, EMBED)

    out = encoder_image_aggr(images, params)
    out = jax.block_until_ready(out)

    ref = reference(images, params)
    assert out.shape == (B, N, EMBED), out.shape
    # Tolerance accounts for the bf16 MXU path (accumulation/statistics are f32).
    assert jnp.allclose(out, ref, atol=5e-2, rtol=5e-2), float(jnp.max(jnp.abs(out - ref)))

    print("KERNEL_OK")
</pallas_src>

<mosaic_0001>
module attributes {stable_mosaic.version = 11 : i64} {
  func.func @_apply_kernel(%arg0: i32, %arg1: memref<16x128xbf16, #tpu.memory_space<vmem>>, %arg2: memref<128x256xbf16, #tpu.memory_space<vmem>>, %arg3: memref<1x256xf32, #tpu.memory_space<vmem>>, %arg4: memref<1x128xf32, #tpu.memory_space<vmem>>, %arg5: memref<1x128xf32, #tpu.memory_space<vmem>>, %arg6: memref<128x128xbf16, #tpu.memory_space<vmem>>, %arg7: memref<1x128xf32, #tpu.memory_space<vmem>>, %arg8: memref<16x128xf32, #tpu.memory_space<vmem>>) attributes {dimension_semantics = [#tpu.dimension_semantics<parallel>], iteration_bounds = array<i64: 1>, scalar_prefetch = 0 : i64, scratch_operands = 0 : i64, tpu.core_type = #tpu.core_type<tc>, window_params = [{transform_indices = @transform_0, window_bounds = array<i64: 16, 128>}, {pipeline_mode = #tpu.pipeline_mode<synchronous>, transform_indices = @transform_1, window_bounds = array<i64: 128, 256>}, {pipeline_mode = #tpu.pipeline_mode<synchronous>, transform_indices = @transform_2, window_bounds = array<i64: 1, 256>}, {pipeline_mode = #tpu.pipeline_mode<synchronous>, transform_indices = @transform_3, window_bounds = array<i64: 1, 128>}, {pipeline_mode = #tpu.pipeline_mode<synchronous>, transform_indices = @transform_4, window_bounds = array<i64: 1, 128>}, {pipeline_mode = #tpu.pipeline_mode<synchronous>, transform_indices = @transform_5, window_bounds = array<i64: 128, 128>}, {pipeline_mode = #tpu.pipeline_mode<synchronous>, transform_indices = @transform_6, window_bounds = array<i64: 1, 128>}, {transform_indices = @transform_7, window_bounds = array<i64: 16, 128>}]} {
    %c0 = arith.constant 0 : index
    %c0_0 = arith.constant 0 : index
    %0 = vector.load %arg1[%c0, %c0_0] : memref<16x128xbf16, #tpu.memory_space<vmem>>, vector<16x128xbf16>
    %c0_1 = arith.constant 0 : index
    %c0_2 = arith.constant 0 : index
    %1 = vector.load %arg2[%c0_1, %c0_2] : memref<128x256xbf16, #tpu.memory_space<vmem>>, vector<128x256xbf16>
    %cst = arith.constant dense<0.000000e+00> : vector<16x256xf32>
    %2 = tpu.matmul %0, %1, %cst {dimension_numbers = #tpu.dot_dimension_numbers<[1], [0], [0], [1], [0, 0, 1, 1], [], []>} : vector<16x128xbf16>, vector<128x256xbf16>, vector<16x256xf32> -> vector<16x256xf32>
    %c0_3 = arith.constant 0 : index
    %c0_4 = arith.constant 0 : index
    %3 = vector.load %arg3[%c0_3, %c0_4] : memref<1x256xf32, #tpu.memory_space<vmem>>, vector<1x256xf32>
    %4 = vector.broadcast %3 : vector<1x256xf32> to vector<16x256xf32>
    %5 = arith.addf %2, %4 : vector<16x256xf32>
    %6 = vector.extract_strided_slice %5 {offsets = [0, 0], sizes = [16, 128], strides = [1, 1]} : vector<16x256xf32> to vector<16x128xf32>
    %7 = vector.extract_strided_slice %5 {offsets = [0, 128], sizes = [16, 128], strides = [1, 1]} : vector<16x256xf32> to vector<16x128xf32>
    %c0_5 = arith.constant 0 : index
    %c0_6 = arith.constant 0 : index
    %8 = vector.load %arg4[%c0_5, %c0_6] : memref<1x128xf32, #tpu.memory_space<vmem>>, vector<1x128xf32>
    %9 = vector.broadcast %8 : vector<1x128xf32> to vector<16x128xf32>
    %10 = arith.mulf %6, %9 : vector<16x128xf32>
    %c0_7 = arith.constant 0 : index
    %c0_8 = arith.constant 0 : index
    %11 = vector.load %arg5[%c0_7, %c0_8] : memref<1x128xf32, #tpu.memory_space<vmem>>, vector<1x128xf32>
    %12 = vector.broadcast %11 : vector<1x128xf32> to vector<16x128xf32>
    %13 = arith.addf %10, %12 : vector<16x128xf32>
    %cst_9 = arith.constant 0.000000e+00 : f32
    %14 = vector.broadcast %cst_9 : f32 to vector<16x128xf32>
    %15 = arith.maximumf %13, %14 : vector<16x128xf32>
    %16 = arith.truncf %15 : vector<16x128xf32> to vector<16x128xbf16>
    %c0_10 = arith.constant 0 : index
    %c0_11 = arith.constant 0 : index
    %17 = vector.load %arg6[%c0_10, %c0_11] : memref<128x128xbf16, #tpu.memory_space<vmem>>, vector<128x128xbf16>
    %cst_12 = arith.constant dense<0.000000e+00> : vector<16x128xf32>
    %18 = tpu.matmul %16, %17, %cst_12 {dimension_numbers = #tpu.dot_dimension_numbers<[1], [0], [0], [1], [0, 0, 1, 1], [], []>} : vector<16x128xbf16>, vector<128x128xbf16>, vector<16x128xf32> -> vector<16x128xf32>
    %c0_13 = arith.constant 0 : index
    %c0_14 = arith.constant 0 : index
    %19 = vector.load %arg7[%c0_13, %c0_14] : memref<1x128xf32, #tpu.memory_space<vmem>>, vector<1x128xf32>
    %20 = vector.broadcast %19 : vector<1x128xf32> to vector<16x128xf32>
    %21 = arith.addf %18, %20 : vector<16x128xf32>
    %22 = arith.addf %21, %7 : vector<16x128xf32>
    %c0_15 = arith.constant 0 : index
    %c0_16 = arith.constant 0 : index
    %23 = vector.load %arg8[%c0_15, %c0_16] : memref<16x128xf32, #tpu.memory_space<vmem>>, vector<16x128xf32>
    tpu.vector_store %arg8[%c0_15, %c0_16], %22 {strides = array<i32>} : memref<16x128xf32, #tpu.memory_space<vmem>>, vector<16x128xf32>,
    return
  }
  func.func @transform_0(%arg0: i32) -> (i32, i32) {
    %c0_i32 = arith.constant 0 : i32
    %c0_i32_0 = arith.constant 0 : i32
    return %arg0, %c0_i32 : i32, i32
  }
  func.func @transform_1(%arg0: i32) -> (i32, i32) {
    %c0_i32 = arith.constant 0 : i32
    %c0_i32_0 = arith.constant 0 : i32
    %c0_i32_1 = arith.constant 0 : i32
    return %c0_i32, %c0_i32_0 : i32, i32
  }
  func.func @transform_2(%arg0: i32) -> (i32, i32) {
    %c0_i32 = arith.constant 0 : i32
    %c0_i32_0 = arith.constant 0 : i32
    %c0_i32_1 = arith.constant 0 : i32
    return %c0_i32, %c0_i32_0 : i32, i32
  }
  func.func @transform_3(%arg0: i32) -> (i32, i32) {
    %c0_i32 = arith.constant 0 : i32
    %c0_i32_0 = arith.constant 0 : i32
    %c0_i32_1 = arith.constant 0 : i32
    return %c0_i32, %c0_i32_0 : i32, i32
  }
  func.func @transform_4(%arg0: i32) -> (i32, i32) {
    %c0_i32 = arith.constant 0 : i32
    %c0_i32_0 = arith.constant 0 : i32
    %c0_i32_1 = arith.constant 0 : i32
    return %c0_i32, %c0_i32_0 : i32, i32
  }
  func.func @transform_5(%arg0: i32) -> (i32, i32) {
    %c0_i32 = arith.constant 0 : i32
    %c0_i32_0 = arith.constant 0 : i32
    %c0_i32_1 = arith.constant 0 : i32
    return %c0_i32, %c0_i32_0 : i32, i32
  }
  func.func @transform_6(%arg0: i32) -> (i32, i32) {
    %c0_i32 = arith.constant 0 : i32
    %c0_i32_0 = arith.constant 0 : i32
    %c0_i32_1 = arith.constant 0 : i32
    return %c0_i32, %c0_i32_0 : i32, i32
  }
  func.func @transform_7(%arg0: i32) -> (i32, i32) {
    %c0_i32 = arith.constant 0 : i32
    %c0_i32_0 = arith.constant 0 : i32
    return %arg0, %c0_i32 : i32, i32
  }
}

module attributes {stable_mosaic.version = 11 : i64} {
  func.func @_stats_kernel(%arg0: i32, %arg1: memref<16x128xbf16, #tpu.memory_space<vmem>>, %arg2: memref<128x128xbf16, #tpu.memory_space<vmem>>, %arg3: memref<1x128xf32, #tpu.memory_space<vmem>>, %arg4: memref<2x128xf32, #tpu.memory_space<vmem>>) attributes {dimension_semantics = [#tpu.dimension_semantics<arbitrary>], iteration_bounds = array<i64: 1>, scalar_prefetch = 0 : i64, scratch_operands = 0 : i64, tpu.core_type = #tpu.core_type<tc>, window_params = [{transform_indices = @transform_0, window_bounds = array<i64: 16, 128>}, {pipeline_mode = #tpu.pipeline_mode<synchronous>, transform_indices = @transform_1, window_bounds = array<i64: 128, 128>}, {pipeline_mode = #tpu.pipeline_mode<synchronous>, transform_indices = @transform_2, window_bounds = array<i64: 1, 128>}, {pipeline_mode = #tpu.pipeline_mode<synchronous>, transform_indices = @transform_3, window_bounds = array<i64: 2, 128>}]} {
    %c0_i32 = arith.constant 0 : i32
    %0 = arith.cmpi eq, %arg0, %c0_i32 : i32
    %1 = arith.extui %0 : i1 to i32
    %c0_i32_0 = arith.constant 0 : i32
    %2 = arith.cmpi ne, %1, %c0_i32_0 : i32
    scf.if %2 {
      %cst_13 = arith.constant 0.000000e+00 : f32
      %17 = vector.broadcast %cst_13 : f32 to vector<2x128xf32>
      %c0_14 = arith.constant 0 : index
      %c0_15 = arith.constant 0 : index
      %18 = vector.load %arg4[%c0_14, %c0_15] : memref<2x128xf32, #tpu.memory_space<vmem>>, vector<2x128xf32>
      tpu.vector_store %arg4[%c0_14, %c0_15], %17 {strides = array<i32>} : memref<2x128xf32, #tpu.memory_space<vmem>>, vector<2x128xf32>,
    } else {
    }
    %c0 = arith.constant 0 : index
    %c0_1 = arith.constant 0 : index
    %3 = vector.load %arg1[%c0, %c0_1] : memref<16x128xbf16, #tpu.memory_space<vmem>>, vector<16x128xbf16>
    %c0_2 = arith.constant 0 : index
    %c0_3 = arith.constant 0 : index
    %4 = vector.load %arg2[%c0_2, %c0_3] : memref<128x128xbf16, #tpu.memory_space<vmem>>, vector<128x128xbf16>
    %cst = arith.constant dense<0.000000e+00> : vector<16x128xf32>
    %5 = tpu.matmul %3, %4, %cst {dimension_numbers = #tpu.dot_dimension_numbers<[1], [0], [0], [1], [0, 0, 1, 1], [], []>} : vector<16x128xbf16>, vector<128x128xbf16>, vector<16x128xf32> -> vector<16x128xf32>
    %c0_4 = arith.constant 0 : index
    %c0_5 = arith.constant 0 : index
    %6 = vector.load %arg3[%c0_4, %c0_5] : memref<1x128xf32, #tpu.memory_space<vmem>>, vector<1x128xf32>
    %7 = vector.broadcast %6 : vector<1x128xf32> to vector<16x128xf32>
    %8 = arith.addf %5, %7 : vector<16x128xf32>
    %cst_6 = arith.constant 1.000000e+00 : f32
    %9 = vector.broadcast %cst_6 : f32 to vector<1x16xf32>
    %cst_7 = arith.constant dense<0.000000e+00> : vector<1x128xf32>
    %10 = tpu.matmul %9, %8, %cst_7 {dimension_numbers = #tpu.dot_dimension_numbers<[1], [0], [0], [1], [0, 0, 1, 1], [], []>} : vector<1x16xf32>, vector<16x128xf32>, vector<1x128xf32> -> vector<1x128xf32>
    %11 = arith.mulf %8, %8 : vector<16x128xf32>
    %cst_8 = arith.constant dense<0.000000e+00> : vector<1x128xf32>
    %12 = tpu.matmul %9, %11, %cst_8 {dimension_numbers = #tpu.dot_dimension_numbers<[1], [0], [0], [1], [0, 0, 1, 1], [], []>} : vector<1x16xf32>, vector<16x128xf32>, vector<1x128xf32> -> vector<1x128xf32>
    %c0_9 = arith.constant 0 : index
    %c0_10 = arith.constant 0 : index
    %13 = vector.load %arg4[%c0_9, %c0_10] : memref<2x128xf32, #tpu.memory_space<vmem>>, vector<2x128xf32>
    %14 = tpu.concatenate %10, %12 in 0 : vector<1x128xf32>, vector<1x128xf32> -> vector<2x128xf32>
    %15 = arith.addf %13, %14 : vector<2x128xf32>
    %c0_11 = arith.constant 0 : index
    %c0_12 = arith.constant 0 : index
    %16 = vector.load %arg4[%c0_11, %c0_12] : memref<2x128xf32, #tpu.memory_space<vmem>>, vector<2x128xf32>
    tpu.vector_store %arg4[%c0_11, %c0_12], %15 {strides = array<i32>} : memref<2x128xf32, #tpu.memory_space<vmem>>, vector<2x128xf32>,
    return
  }
  func.func @transform_0(%arg0: i32) -> (i32, i32) {
    %c0_i32 = arith.constant 0 : i32
    %c0_i32_0 = arith.constant 0 : i32
    return %arg0, %c0_i32 : i32, i32
  }
  func.func @transform_1(%arg0: i32) -> (i32, i32) {
    %c0_i32 = arith.constant 0 : i32
    %c0_i32_0 = arith.constant 0 : i32
    %c0_i32_1 = arith.constant 0 : i32
    return %c0_i32, %c0_i32_0 : i32, i32
  }
  func.func @transform_2(%arg0: i32) -> (i32, i32) {
    %c0_i32 = arith.constant 0 : i32
    %c0_i32_0 = arith.constant 0 : i32
    %c0_i32_1 = arith.constant 0 : i32
    return %c0_i32, %c0_i32_0 : i32, i32
  }
  func.func @transform_3(%arg0: i32) -> (i32, i32) {
    %c0_i32 = arith.constant 0 : i32
    %c0_i32_0 = arith.constant 0 : i32
    %c0_i32_1 = arith.constant 0 : i32
    return %c0_i32, %c0_i32_0 : i32, i32
  }
}

</mosaic_0001>

<llo_original>
// kernel: encoder_image_aggr.2
$region0: #{encoder_image_aggr.2}
  #allocation0 [shape = 'u32[]', space=smem, size = 0x4, offset = 0x4, fixed_abs, tag = 'smem constant byte address 0x4 - core index']
  #allocation1 [shape = 'u32[144,128]{1,0:T(1,128)}', space=vmem, size = 0x12000, scoped, tag = 'internal scratch']
  %s0 = inlined_call_operand.vmem [shape: bf16[16,128], index: 0, kind: input, shape index: {}]
  %s1 = inlined_call_operand.vmem [shape: bf16[128,128], index: 1, kind: input, shape index: {}]
  %s2 = inlined_call_operand.vmem [shape: f32[1,128], index: 2, kind: input, shape index: {}]
  %s3 = inlined_call_operand.vmem [shape: f32[2,128], index: 3, kind: output, shape index: {}]
  %s4 = sld [smem:[#allocation0]]
  $region26: #{encoder_image_aggr.2} parent=0
    _
  %s6 = ssub.s32 1, %s4
  %s7 = scalar_select 0, %s6, %s4
  // Predicated region
  $region2: #{encoder_image_aggr.2} parent=0 // pred_check
    _
  $region3: #{encoder_image_aggr.2} parent=0 // pred_check_branch
    %9 = sbr.rel (0) target = $region5
  $region4: #{encoder_image_aggr.2} parent=0 // pred_region
    _
  $region5: #{encoder_image_aggr.2} parent=0 // pred_fallthru
    _
  // Predicated region
  $region6: #{encoder_image_aggr.2} parent=0 // pred_check
    _
  $region7: #{encoder_image_aggr.2} parent=0 // pred_check_branch
    %11 = sbr.rel (0) target = $region9
  $region8: #{encoder_image_aggr.2} parent=0 // pred_region
    _
  $region9: #{encoder_image_aggr.2} parent=0 // pred_fallthru
    _
  // Predicated region
  $region10: #{encoder_image_aggr.2} parent=0 // pred_check
    _
  $region11: #{encoder_image_aggr.2} parent=0 // pred_check_branch
    %13 = sbr.rel (0) target = $region13
  $region12: #{encoder_image_aggr.2} parent=0 // pred_region
    _
  $region13: #{encoder_image_aggr.2} parent=0 // pred_fallthru
    _
  %p15 = scmp.eq.s32.totalorder 0, 0
  // Predicated region
  $region14: #{encoder_image_aggr.2} parent=0 // pred_check
    %p16 = pneg %p15
  $region15: #{encoder_image_aggr.2} parent=0 // pred_check_branch
    %18 = sbr.rel (%p16) target = $region17
  $region16: #{encoder_image_aggr.2} parent=0 // pred_region
    %19 = vst [vmem:[%s3] sm:$0x3] 0.0
  $region17: #{encoder_image_aggr.2} parent=0 // pred_fallthru
    _
  %v20 = vld [vmem:[%s0] sm:$0xf]
  %v21 = vld [vmem:[%s0 + $0x4] sm:$0xf]
  %v22 = vld [vmem:[%s1] sm:$0xf]
  %v23 = vld [vmem:[%s1 + $0x4] sm:$0xf]
  %v24 = vld [vmem:[%s1 + $0x8] sm:$0xf]
  %v25 = vld [vmem:[%s1 + $0xc] sm:$0xf]
  %v26 = vld [vmem:[%s1 + $0x10] sm:$0xf]
  %v27 = vld [vmem:[%s1 + $0x14] sm:$0xf]
  %v28 = vld [vmem:[%s1 + $0x18] sm:$0xf]
  %v29 = vld [vmem:[%s1 + $0x1c] sm:$0xf]
  %v30 = vld [vmem:[%s1 + $0x20] sm:$0xf]
  %v31 = vld [vmem:[%s1 + $0x24] sm:$0xf]
  %v32 = vld [vmem:[%s1 + $0x28] sm:$0xf]
  %v33 = vld [vmem:[%s1 + $0x2c] sm:$0xf]
  %v34 = vld [vmem:[%s1 + $0x30] sm:$0xf]
  %v35 = vld [vmem:[%s1 + $0x34] sm:$0xf]
  %v36 = vld [vmem:[%s1 + $0x38] sm:$0xf]
  %v37 = vld [vmem:[%s1 + $0x3c] sm:$0xf]
  %v38 = vld [vmem:[%s2] sm:$0x1]
  %v40 = vlaneseq
  %v41 = vshrl.u32 %v40, 7
  %v42 = vsub.s32 0, %v41
  %v43 = vrot.slane %v38, %v42
  %v47 = vunpack.c.l.b16 %v20
  %v48 = vunpack.c.l.b16 %v21
  %v49 = vpack.c.b16 %v48, %v47
  %v67 = vunpack.c.l.b16 %v22
  %v68 = vunpack.c.l.b16 %v23
  %v69 = vunpack.c.l.b16 %v24
  %v70 = vunpack.c.l.b16 %v25
  %v71 = vunpack.c.l.b16 %v26
  %v72 = vunpack.c.l.b16 %v27
  %v73 = vunpack.c.l.b16 %v28
  %v74 = vunpack.c.l.b16 %v29
  %v75 = vunpack.c.l.b16 %v30
  %v76 = vunpack.c.l.b16 %v31
  %v77 = vunpack.c.l.b16 %v32
  %v78 = vunpack.c.l.b16 %v33
  %v79 = vunpack.c.l.b16 %v34
  %v80 = vunpack.c.l.b16 %v35
  %v81 = vunpack.c.l.b16 %v36
  %v82 = vunpack.c.l.b16 %v37
  %v83 = vpack.c.b16 %v68, %v67
  %v84 = vpack.c.b16 %v70, %v69
  %v85 = vpack.c.b16 %v72, %v71
  %v86 = vpack.c.b16 %v74, %v73
  %v87 = vpack.c.b16 %v76, %v75
  %v88 = vpack.c.b16 %v78, %v77
  %v89 = vpack.c.b16 %v80, %v79
  %v90 = vpack.c.b16 %v82, %v81
  %99 = vmatprep.subr.bf16.mxu0 0
  %100 = vmatpush1.bf16.msra.mxu0 %v83
  %101 = vmatprep.subr.bf16.mxu0 0
  %102 = vmatpush1.bf16.msra.mxu0 %v84
  %103 = vmatprep.subr.bf16.mxu0 0
  %104 = vmatpush1.bf16.msra.mxu0 %v85
  %105 = vmatprep.subr.bf16.mxu0 0
  %106 = vmatpush1.bf16.msra.mxu0 %v86
  %107 = vmatprep.subr.bf16.mxu0 0
  %108 = vmatpush1.bf16.msra.mxu0 %v87
  %109 = vmatprep.subr.bf16.mxu0 0
  %110 = vmatpush1.bf16.msra.mxu0 %v88
  %111 = vmatprep.subr.bf16.mxu0 0
  %112 = vmatpush1.bf16.msra.mxu0 %v89
  %113 = vmatprep.subr.bf16.mxu0 0
  %114 = vmatpush1.bf16.msra.mxu0 %v90
  %115 = vmatprep.subr.bf16.mxu0 0
  %116 = vmatpush1.bf16.msra.mxu0 0
  %117 = vmatprep.subr.bf16.mxu0 0
  %118 = vmatpush1.bf16.msra.mxu0 0
  %119 = vmatprep.subr.bf16.mxu0 0
  %120 = vmatpush1.bf16.msra.mxu0 0
  %121 = vmatprep.subr.bf16.mxu0 0
  %122 = vmatpush1.bf16.msra.mxu0 0
  %123 = vmatprep.subr.bf16.mxu0 0
  %124 = vmatpush1.bf16.msra.mxu0 0
  %125 = vmatprep.subr.bf16.mxu0 0
  %126 = vmatpush1.bf16.msra.mxu0 0
  %127 = vmatprep.subr.bf16.mxu0 0
  %128 = vmatpush1.bf16.msra.mxu0 0
  %129 = vmatprep.subr.bf16.mxu0 0
  %130 = vmatpush1.bf16.msra.mxu0 0
  %131 = vmatprep.mubr.bf16.mxu0 0
  %132 = vmatmul.mubr.bf16.gmra.mrb[0].mxu0 %v49
  %v133 = vpop.f32.mrb[0].mxu0
  %v134 = vadd.f32 %v43, %v133
  %v135 = vpop.f32.mrb[0].mxu0
  %v136 = vpop.f32.mrb[0].mxu0
  %v137 = vadd.f32 %v43, %v136
  %v138 = vpop.f32.mrb[0].mxu0
  %139 = vdwg.mxu0
  %vm140 = vcmask 130048
  %v142 = vsel %vm140, 1.0, 0
  %144 = vmatprep.subr.mxu0 0.0
  %145 = vmatpush1.msra.mxu0 %v134
  %146 = vmatprep.subr.mxu0 0.0
  %147 = vmatpush1.msra.mxu0 %v137
  %148 = vmatprep.subr.mxu0 0.0
  %149 = vmatpush1.msra.mxu0 0.0
  %150 = vmatprep.subr.mxu0 0.0
  %151 = vmatpush1.msra.mxu0 0.0
  %152 = vmatprep.subr.mxu0 0.0
  %153 = vmatpush1.msra.mxu0 0.0
  %154 = vmatprep.subr.mxu0 0.0
  %155 = vmatpush1.msra.mxu0 0.0
  %156 = vmatprep.subr.mxu0 0.0
  %157 = vmatpush1.msra.mxu0 0.0
  %158 = vmatprep.subr.mxu0 0.0
  %159 = vmatpush1.msra.mxu0 0.0
  %160 = vmatprep.subr.mxu0 0.0
  %161 = vmatpush1.msra.mxu0 0.0
  %162 = vmatprep.subr.mxu0 0.0
  %163 = vmatpush1.msra.mxu0 0.0
  %164 = vmatprep.subr.mxu0 0.0
  %165 = vmatpush1.msra.mxu0 0.0
  %166 = vmatprep.subr.mxu0 0.0
  %167 = vmatpush1.msra.mxu0 0.0
  %168 = vmatprep.subr.mxu0 0.0
  %169 = vmatpush1.msra.mxu0 0.0
  %170 = vmatprep.subr.mxu0 0.0
  %171 = vmatpush1.msra.mxu0 0.0
  %172 = vmatprep.subr.mxu0 0.0
  %173 = vmatpush1.msra.mxu0 0.0
  %174 = vmatprep.subr.mxu0 0.0
  %175 = vmatpush1.msra.mxu0 0.0
  %176 = vmatprep.subr.mxu0 0.0
  %177 = vmatpush1.msra.mxu0 0.0
  %178 = vmatprep.subr.mxu0 0.0
  %179 = vmatpush1.msra.mxu0 0.0
  %180 = vmatprep.subr.mxu0 0.0
  %181 = vmatpush1.msra.mxu0 0.0
  %182 = vmatprep.subr.mxu0 0.0
  %183 = vmatpush1.msra.mxu0 0.0
  %184 = vmatprep.subr.mxu0 0.0
  %185 = vmatpush1.msra.mxu0 0.0
  %186 = vmatprep.subr.mxu0 0.0
  %187 = vmatpush1.msra.mxu0 0.0
  %188 = vmatprep.subr.mxu0 0.0
  %189 = vmatpush1.msra.mxu0 0.0
  %190 = vmatprep.subr.mxu0 0.0
  %191 = vmatpush1.msra.mxu0 0.0
  %192 = vmatprep.subr.mxu0 0.0
  %193 = vmatpush1.msra.mxu0 0.0
  %194 = vmatprep.subr.mxu0 0.0
  %195 = vmatpush1.msra.mxu0 0.0
  %196 = vmatprep.subr.mxu0 0.0
  %197 = vmatpush1.msra.mxu0 0.0
  %198 = vmatprep.subr.mxu0 0.0
  %199 = vmatpush1.msra.mxu0 0.0
  %200 = vmatprep.subr.mxu0 0.0
  %201 = vmatpush1.msra.mxu0 0.0
  %202 = vmatprep.subr.mxu0 0.0
  %203 = vmatpush1.msra.mxu0 0.0
  %204 = vmatprep.subr.mxu0 0.0
  %205 = vmatpush1.msra.mxu0 0.0
  %206 = vmatprep.subr.mxu0 0.0
  %207 = vmatpush1.msra.mxu0 0.0
  %208 = vmatprep.mubr.f32.mxu0 0.0
  %209 = vmatmul.mubr.f32.gmra.mrb[0].mxu0 %v142
  %v210 = vpop.f32.mrb[0].mxu0
  %v211 = vadd.f32 0.0, %v210
  %v212 = vpop.f32.mrb[0].mxu0
  %213 = vdwg.mxu0
  %v214 = vmul.f32 %v134, %v134
  %v215 = vmul.f32 %v137, %v137
  %216 = vmatprep.subr.mxu0 0.0
  %217 = vmatpush1.msra.mxu0 %v214
  %218 = vmatprep.subr.mxu0 0.0
  %219 = vmatpush1.msra.mxu0 %v215
  %220 = vmatprep.subr.mxu0 0.0
  %221 = vmatpush1.msra.mxu0 0.0
  %222 = vmatprep.subr.mxu0 0.0
  %223 = vmatpush1.msra.mxu0 0.0
  %224 = vmatprep.subr.mxu0 0.0
  %225 = vmatpush1.msra.mxu0 0.0
  %226 = vmatprep.subr.mxu0 0.0
  %227 = vmatpush1.msra.mxu0 0.0
  %228 = vmatprep.subr.mxu0 0.0
  %229 = vmatpush1.msra.mxu0 0.0
  %230 = vmatprep.subr.mxu0 0.0
  %231 = vmatpush1.msra.mxu0 0.0
  %232 = vmatprep.subr.mxu0 0.0
  %233 = vmatpush1.msra.mxu0 0.0
  %234 = vmatprep.subr.mxu0 0.0
  %235 = vmatpush1.msra.mxu0 0.0
  %236 = vmatprep.subr.mxu0 0.0
  %237 = vmatpush1.msra.mxu0 0.0
  %238 = vmatprep.subr.mxu0 0.0
  %239 = vmatpush1.msra.mxu0 0.0
  %240 = vmatprep.subr.mxu0 0.0
  %241 = vmatpush1.msra.mxu0 0.0
  %242 = vmatprep.subr.mxu0 0.0
  %243 = vmatpush1.msra.mxu0 0.0
  %244 = vmatprep.subr.mxu0 0.0
  %245 = vmatpush1.msra.mxu0 0.0
  %246 = vmatprep.subr.mxu0 0.0
  %247 = vmatpush1.msra.mxu0 0.0
  %248 = vmatprep.subr.mxu0 0.0
  %249 = vmatpush1.msra.mxu0 0.0
  %250 = vmatprep.subr.mxu0 0.0
  %251 = vmatpush1.msra.mxu0 0.0
  %252 = vmatprep.subr.mxu0 0.0
  %253 = vmatpush1.msra.mxu0 0.0
  %254 = vmatprep.subr.mxu0 0.0
  %255 = vmatpush1.msra.mxu0 0.0
  %256 = vmatprep.subr.mxu0 0.0
  %257 = vmatpush1.msra.mxu0 0.0
  %258 = vmatprep.subr.mxu0 0.0
  %259 = vmatpush1.msra.mxu0 0.0
  %260 = vmatprep.subr.mxu0 0.0
  %261 = vmatpush1.msra.mxu0 0.0
  %262 = vmatprep.subr.mxu0 0.0
  %263 = vmatpush1.msra.mxu0 0.0
  %264 = vmatprep.subr.mxu0 0.0
  %265 = vmatpush1.msra.mxu0 0.0
  %266 = vmatprep.subr.mxu0 0.0
  %267 = vmatpush1.msra.mxu0 0.0
  %268 = vmatprep.subr.mxu0 0.0
  %269 = vmatpush1.msra.mxu0 0.0
  %270 = vmatprep.subr.mxu0 0.0
  %271 = vmatpush1.msra.mxu0 0.0
  %272 = vmatprep.subr.mxu0 0.0
  %273 = vmatpush1.msra.mxu0 0.0
  %274 = vmatprep.subr.mxu0 0.0
  %275 = vmatpush1.msra.mxu0 0.0
  %276 = vmatprep.subr.mxu0 0.0
  %277 = vmatpush1.msra.mxu0 0.0
  %278 = vmatprep.subr.mxu0 0.0
  %279 = vmatpush1.msra.mxu0 0.0
  %280 = vmatprep.mubr.f32.mxu0 0.0
  %281 = vmatmul.mubr.f32.gmra.mrb[0].mxu0 %v142
  %v282 = vpop.f32.mrb[0].mxu0
  %v283 = vadd.f32 0.0, %v282
  %v284 = vpop.f32.mrb[0].mxu0
  %285 = vdwg.mxu0
  %v286 = vld [vmem:[%s3] sm:$0x3]
  %v288 = vrot.slane %v283, 7
  %vm290 = vcmask 1040384
  %v291 = vsel %vm290, %v211, %v288
  %v292 = vadd.f32 %v286, %v291
  %293 = vst [vmem:[%s3] sm:$0x3] %v292
  // Predicated region
  $region18: #{encoder_image_aggr.2} parent=0 // pred_check
    _
  $region19: #{encoder_image_aggr.2} parent=0 // pred_check_branch
    %295 = sbr.rel (0) target = $region21
  $region20: #{encoder_image_aggr.2} parent=0 // pred_region
    _
  $region21: #{encoder_image_aggr.2} parent=0 // pred_fallthru
    _
  // Predicated region
  $region22: #{encoder_image_aggr.2} parent=0 // pred_check
    _
  $region23: #{encoder_image_aggr.2} parent=0 // pred_check_branch
    %297 = sbr.rel (0) target = $region25
  $region24: #{encoder_image_aggr.2} parent=0 // pred_region
    _
  $region25: #{encoder_image_aggr.2} parent=0 // pred_fallthru
    _

// kernel: encoder_image_aggr.3
$region0: #{encoder_image_aggr.3}
  #allocation0 [shape = 'u32[]', space=smem, size = 0x4, offset = 0x4, fixed_abs, tag = 'smem constant byte address 0x4 - core index']
  #allocation1 [shape = 'u32[144,128]{1,0:T(1,128)}', space=vmem, size = 0x12000, scoped, tag = 'internal scratch']
  %s0 = inlined_call_operand.vmem [shape: bf16[16,128], index: 0, kind: input, shape index: {}]
  %s1 = inlined_call_operand.vmem [shape: bf16[128,256], index: 1, kind: input, shape index: {}]
  %s2 = inlined_call_operand.vmem [shape: f32[1,256], index: 2, kind: input, shape index: {}]
  %s3 = inlined_call_operand.vmem [shape: f32[1,128], index: 3, kind: input, shape index: {}]
  %s4 = inlined_call_operand.vmem [shape: f32[1,128], index: 4, kind: input, shape index: {}]
  %s5 = inlined_call_operand.vmem [shape: bf16[128,128], index: 5, kind: input, shape index: {}]
  %s6 = inlined_call_operand.vmem [shape: f32[1,128], index: 6, kind: input, shape index: {}]
  %s7 = inlined_call_operand.vmem [shape: f32[16,128], index: 7, kind: output, shape index: {}]
  %s8 = sld [smem:[#allocation0]]
  $region38: #{encoder_image_aggr.3} parent=0
    _
  %s10 = ssub.s32 1, %s8
  %s11 = scalar_select 0, %s10, %s8
  // Predicated region
  $region2: #{encoder_image_aggr.3} parent=0 // pred_check
    _
  $region3: #{encoder_image_aggr.3} parent=0 // pred_check_branch
    %13 = sbr.rel (0) target = $region5
  $region4: #{encoder_image_aggr.3} parent=0 // pred_region
    _
  $region5: #{encoder_image_aggr.3} parent=0 // pred_fallthru
    _
  // Predicated region
  $region6: #{encoder_image_aggr.3} parent=0 // pred_check
    _
  $region7: #{encoder_image_aggr.3} parent=0 // pred_check_branch
    %15 = sbr.rel (0) target = $region9
  $region8: #{encoder_image_aggr.3} parent=0 // pred_region
    _
  $region9: #{encoder_image_aggr.3} parent=0 // pred_fallthru
    _
  // Predicated region
  $region10: #{encoder_image_aggr.3} parent=0 // pred_check
    _
  $region11: #{encoder_image_aggr.3} parent=0 // pred_check_branch
    %17 = sbr.rel (0) target = $region13
  $region12: #{encoder_image_aggr.3} parent=0 // pred_region
    _
  $region13: #{encoder_image_aggr.3} parent=0 // pred_fallthru
    _
  // Predicated region
  $region14: #{encoder_image_aggr.3} parent=0 // pred_check
    _
  $region15: #{encoder_image_aggr.3} parent=0 // pred_check_branch
    %19 = sbr.rel (0) target = $region17
  $region16: #{encoder_image_aggr.3} parent=0 // pred_region
    _
  $region17: #{encoder_image_aggr.3} parent=0 // pred_fallthru
    _
  // Predicated region
  $region18: #{encoder_image_aggr.3} parent=0 // pred_check
    _
  $region19: #{encoder_image_aggr.3} parent=0 // pred_check_branch
    %21 = sbr.rel (0) target = $region21
  $region20: #{encoder_image_aggr.3} parent=0 // pred_region
    _
  $region21: #{encoder_image_aggr.3} parent=0 // pred_fallthru
    _
  // Predicated region
  $region22: #{encoder_image_aggr.3} parent=0 // pred_check
    _
  $region23: #{encoder_image_aggr.3} parent=0 // pred_check_branch
    %23 = sbr.rel (0) target = $region25
  $region24: #{encoder_image_aggr.3} parent=0 // pred_region
    _
  $region25: #{encoder_image_aggr.3} parent=0 // pred_fallthru
    _
  // Predicated region
  $region26: #{encoder_image_aggr.3} parent=0 // pred_check
    _
  $region27: #{encoder_image_aggr.3} parent=0 // pred_check_branch
    %25 = sbr.rel (0) target = $region29
  $region28: #{encoder_image_aggr.3} parent=0 // pred_region
    _
  $region29: #{encoder_image_aggr.3} parent=0 // pred_fallthru
    _
  %v27 = vld [vmem:[%s0] sm:$0xf]
  %v28 = vld [vmem:[%s0 + $0x4] sm:$0xf]
  %v29 = vld [vmem:[%s1] sm:$0xff]
  %v30 = vld [vmem:[%s1 + $0x8] sm:$0xff]
  %v31 = vld [vmem:[%s1 + $0x10] sm:$0xff]
  %v32 = vld [vmem:[%s1 + $0x18] sm:$0xff]
  %v33 = vld [vmem:[%s1 + $0x20] sm:$0xff]
  %v34 = vld [vmem:[%s1 + $0x28] sm:$0xff]
  %v35 = vld [vmem:[%s1 + $0x30] sm:$0xff]
  %v36 = vld [vmem:[%s1 + $0x38] sm:$0xff]
  %v37 = vld [vmem:[%s1 + $0x40] sm:$0xff]
  %v38 = vld [vmem:[%s1 + $0x48] sm:$0xff]
  %v39 = vld [vmem:[%s1 + $0x50] sm:$0xff]
  %v40 = vld [vmem:[%s1 + $0x58] sm:$0xff]
  %v41 = vld [vmem:[%s1 + $0x60] sm:$0xff]
  %v42 = vld [vmem:[%s1 + $0x68] sm:$0xff]
  %v43 = vld [vmem:[%s1 + $0x70] sm:$0xff]
  %v44 = vld [vmem:[%s1 + $0x78] sm:$0xff]
  %v45 = vld [vmem:[%s2] sm:$0x3]
  %v47 = vlaneseq
  %v48 = vshrl.u32 %v47, 7
  %v49 = vsub.s32 0, %v48
  %v50 = vrot.slane %v45, %v49
  %v51 = vlaneseq
  %v52 = vshrl.u32 %v51, 7
  %v53 = vsub.s32 1, %v52
  %v54 = vrot.slane %v45, %v53
  %v59 = vunpack.c.l.b16 %v27
  %v60 = vunpack.c.l.b16 %v28
  %v61 = vpack.c.b16 %v60, %v59
  %v79 = vunpack.c.l.b16 %v29
  %v80 = vunpack.c.h.b16 %v29
  %v81 = vunpack.c.l.b16 %v30
  %v82 = vunpack.c.h.b16 %v30
  %v83 = vunpack.c.l.b16 %v31
  %v84 = vunpack.c.h.b16 %v31
  %v85 = vunpack.c.l.b16 %v32
  %v86 = vunpack.c.h.b16 %v32
  %v87 = vunpack.c.l.b16 %v33
  %v88 = vunpack.c.h.b16 %v33
  %v89 = vunpack.c.l.b16 %v34
  %v90 = vunpack.c.h.b16 %v34
  %v91 = vunpack.c.l.b16 %v35
  %v92 = vunpack.c.h.b16 %v35
  %v93 = vunpack.c.l.b16 %v36
  %v94 = vunpack.c.h.b16 %v36
  %v95 = vunpack.c.l.b16 %v37
  %v96 = vunpack.c.h.b16 %v37
  %v97 = vunpack.c.l.b16 %v38
  %v98 = vunpack.c.h.b16 %v38
  %v99 = vunpack.c.l.b16 %v39
  %v100 = vunpack.c.h.b16 %v39
  %v101 = vunpack.c.l.b16 %v40
  %v102 = vunpack.c.h.b16 %v40
  %v103 = vunpack.c.l.b16 %v41
  %v104 = vunpack.c.h.b16 %v41
  %v105 = vunpack.c.l.b16 %v42
  %v106 = vunpack.c.h.b16 %v42
  %v107 = vunpack.c.l.b16 %v43
  %v108 = vunpack.c.h.b16 %v43
  %v109 = vunpack.c.l.b16 %v44
  %v110 = vunpack.c.h.b16 %v44
  %v111 = vpack.c.b16 %v81, %v79
  %v112 = vpack.c.b16 %v82, %v80
  %v113 = vpack.c.b16 %v85, %v83
  %v114 = vpack.c.b16 %v86, %v84
  %v115 = vpack.c.b16 %v89, %v87
  %v116 = vpack.c.b16 %v90, %v88
  %v117 = vpack.c.b16 %v93, %v91
  %v118 = vpack.c.b16 %v94, %v92
  %v119 = vpack.c.b16 %v97, %v95
  %v120 = vpack.c.b16 %v98, %v96
  %v121 = vpack.c.b16 %v101, %v99
  %v122 = vpack.c.b16 %v102, %v100
  %v123 = vpack.c.b16 %v105, %v103
  %v124 = vpack.c.b16 %v106, %v104
  %v125 = vpack.c.b16 %v109, %v107
  %v126 = vpack.c.b16 %v110, %v108
  %143 = vmatprep.subr.bf16.mxu0 %v112
  %144 = vmatpush1.bf16.msra.mxu0 %v111
  %145 = vmatprep.subr.bf16.mxu0 %v114
  %146 = vmatpush1.bf16.msra.mxu0 %v113
  %147 = vmatprep.subr.bf16.mxu0 %v116
  %148 = vmatpush1.bf16.msra.mxu0 %v115
  %149 = vmatprep.subr.bf16.mxu0 %v118
  %150 = vmatpush1.bf16.msra.mxu0 %v117
  %151 = vmatprep.subr.bf16.mxu0 %v120
  %152 = vmatpush1.bf16.msra.mxu0 %v119
  %153 = vmatprep.subr.bf16.mxu0 %v122
  %154 = vmatpush1.bf16.msra.mxu0 %v121
  %155 = vmatprep.subr.bf16.mxu0 %v124
  %156 = vmatpush1.bf16.msra.mxu0 %v123
  %157 = vmatprep.subr.bf16.mxu0 %v126
  %158 = vmatpush1.bf16.msra.mxu0 %v125
  %159 = vmatprep.subr.bf16.mxu0 0
  %160 = vmatpush1.bf16.msra.mxu0 0
  %161 = vmatprep.subr.bf16.mxu0 0
  %162 = vmatpush1.bf16.msra.mxu0 0
  %163 = vmatprep.subr.bf16.mxu0 0
  %164 = vmatpush1.bf16.msra.mxu0 0
  %165 = vmatprep.subr.bf16.mxu0 0
  %166 = vmatpush1.bf16.msra.mxu0 0
  %167 = vmatprep.subr.bf16.mxu0 0
  %168 = vmatpush1.bf16.msra.mxu0 0
  %169 = vmatprep.subr.bf16.mxu0 0
  %170 = vmatpush1.bf16.msra.mxu0 0
  %171 = vmatprep.subr.bf16.mxu0 0
  %172 = vmatpush1.bf16.msra.mxu0 0
  %173 = vmatprep.subr.bf16.mxu0 0
  %174 = vmatpush1.bf16.msra.mxu0 0
  %175 = vmatprep.mubr.bf16.mxu0 0
  %176 = vmatmul.mubr.bf16.gmra.mrb[0].mxu0 %v61
  %v177 = vpop.f32.mrb[0].mxu0
  %v178 = vadd.f32 %v50, %v177
  %v179 = vpop.f32.mrb[0].mxu0
  %v180 = vadd.f32 %v54, %v179
  %v181 = vpop.f32.mrb[0].mxu0
  %v182 = vadd.f32 %v50, %v181
  %v183 = vpop.f32.mrb[0].mxu0
  %v184 = vadd.f32 %v54, %v183
  %185 = vdwg.mxu0
  %v186 = vld [vmem:[%s3] sm:$0x1]
  %v188 = vlaneseq
  %v189 = vshrl.u32 %v188, 7
  %v190 = vsub.s32 0, %v189
  %v191 = vrot.slane %v186, %v190
  %v193 = vmul.f32 %v178, %v191
  %v194 = vmul.f32 %v182, %v191
  %v195 = vld [vmem:[%s4] sm:$0x1]
  %v197 = vlaneseq
  %v198 = vshrl.u32 %v197, 7
  %v199 = vsub.s32 0, %v198
  %v200 = vrot.slane %v195, %v199
  %v202 = vadd.f32 %v193, %v200
  %v203 = vadd.f32 %v194, %v200
  %v204 = vmax.f32 %v202, 0.0
  %v205 = vmax.f32 %v203, 0.0
  %v206 = vpack.c.bf16 %v205, %v204
  %v207 = vld [vmem:[%s5] sm:$0xf]
  %v208 = vld [vmem:[%s5 + $0x4] sm:$0xf]
  %v209 = vld [vmem:[%s5 + $0x8] sm:$0xf]
  %v210 = vld [vmem:[%s5 + $0xc] sm:$0xf]
  %v211 = vld [vmem:[%s5 + $0x10] sm:$0xf]
  %v212 = vld [vmem:[%s5 + $0x14] sm:$0xf]
  %v213 = vld [vmem:[%s5 + $0x18] sm:$0xf]
  %v214 = vld [vmem:[%s5 + $0x1c] sm:$0xf]
  %v215 = vld [vmem:[%s5 + $0x20] sm:$0xf]
  %v216 = vld [vmem:[%s5 + $0x24] sm:$0xf]
  %v217 = vld [vmem:[%s5 + $0x28] sm:$0xf]
  %v218 = vld [vmem:[%s5 + $0x2c] sm:$0xf]
  %v219 = vld [vmem:[%s5 + $0x30] sm:$0xf]
  %v220 = vld [vmem:[%s5 + $0x34] sm:$0xf]
  %v221 = vld [vmem:[%s5 + $0x38] sm:$0xf]
  %v222 = vld [vmem:[%s5 + $0x3c] sm:$0xf]
  %v223 = vld [vmem:[%s6] sm:$0x1]
  %v225 = vlaneseq
  %v226 = vshrl.u32 %v225, 7
  %v227 = vsub.s32 0, %v226
  %v228 = vrot.slane %v223, %v227
  %v246 = vunpack.c.l.b16 %v207
  %v247 = vunpack.c.l.b16 %v208
  %v248 = vunpack.c.l.b16 %v209
  %v249 = vunpack.c.l.b16 %v210
  %v250 = vunpack.c.l.b16 %v211
  %v251 = vunpack.c.l.b16 %v212
  %v252 = vunpack.c.l.b16 %v213
  %v253 = vunpack.c.l.b16 %v214
  %v254 = vunpack.c.l.b16 %v215
  %v255 = vunpack.c.l.b16 %v216
  %v256 = vunpack.c.l.b16 %v217
  %v257 = vunpack.c.l.b16 %v218
  %v258 = vunpack.c.l.b16 %v219
  %v259 = vunpack.c.l.b16 %v220
  %v260 = vunpack.c.l.b16 %v221
  %v261 = vunpack.c.l.b16 %v222
  %v262 = vpack.c.b16 %v247, %v246
  %v263 = vpack.c.b16 %v249, %v248
  %v264 = vpack.c.b16 %v251, %v250
  %v265 = vpack.c.b16 %v253, %v252
  %v266 = vpack.c.b16 %v255, %v254
  %v267 = vpack.c.b16 %v257, %v256
  %v268 = vpack.c.b16 %v259, %v258
  %v269 = vpack.c.b16 %v261, %v260
  %278 = vmatprep.subr.bf16.mxu0 0
  %279 = vmatpush1.bf16.msra.mxu0 %v262
  %280 = vmatprep.subr.bf16.mxu0 0
  %281 = vmatpush1.bf16.msra.mxu0 %v263
  %282 = vmatprep.subr.bf16.mxu0 0
  %283 = vmatpush1.bf16.msra.mxu0 %v264
  %284 = vmatprep.subr.bf16.mxu0 0
  %285 = vmatpush1.bf16.msra.mxu0 %v265
  %286 = vmatprep.subr.bf16.mxu0 0
  %287 = vmatpush1.bf16.msra.mxu0 %v266
  %288 = vmatprep.subr.bf16.mxu0 0
  %289 = vmatpush1.bf16.msra.mxu0 %v267
  %290 = vmatprep.subr.bf16.mxu0 0
  %291 = vmatpush1.bf16.msra.mxu0 %v268
  %292 = vmatprep.subr.bf16.mxu0 0
  %293 = vmatpush1.bf16.msra.mxu0 %v269
  %294 = vmatprep.subr.bf16.mxu0 0
  %295 = vmatpush1.bf16.msra.mxu0 0
  %296 = vmatprep.subr.bf16.mxu0 0
  %297 = vmatpush1.bf16.msra.mxu0 0
  %298 = vmatprep.subr.bf16.mxu0 0
  %299 = vmatpush1.bf16.msra.mxu0 0
  %300 = vmatprep.subr.bf16.mxu0 0
  %301 = vmatpush1.bf16.msra.mxu0 0
  %302 = vmatprep.subr.bf16.mxu0 0
  %303 = vmatpush1.bf16.msra.mxu0 0
  %304 = vmatprep.subr.bf16.mxu0 0
  %305 = vmatpush1.bf16.msra.mxu0 0
  %306 = vmatprep.subr.bf16.mxu0 0
  %307 = vmatpush1.bf16.msra.mxu0 0
  %308 = vmatprep.subr.bf16.mxu0 0
  %309 = vmatpush1.bf16.msra.mxu0 0
  %310 = vmatprep.mubr.bf16.mxu0 0
  %311 = vmatmul.mubr.bf16.gmra.mrb[0].mxu0 %v206
  %v312 = vpop.f32.mrb[0].mxu0
  %v313 = vadd.f32 %v228, %v312
  %v314 = vpop.f32.mrb[0].mxu0
  %v315 = vpop.f32.mrb[0].mxu0
  %v316 = vadd.f32 %v228, %v315
  %v317 = vpop.f32.mrb[0].mxu0
  %318 = vdwg.mxu0
  %v319 = vadd.f32 %v313, %v180
  %v320 = vadd.f32 %v316, %v184
  %321 = vst [vmem:[%s7] sm:$0xff] %v319
  %322 = vst [vmem:[%s7 + $0x8] sm:$0xff] %v320
  // Predicated region
  $region30: #{encoder_image_aggr.3} parent=0 // pred_check
    _
  $region31: #{encoder_image_aggr.3} parent=0 // pred_check_branch
    %324 = sbr.rel (0) target = $region33
  $region32: #{encoder_image_aggr.3} parent=0 // pred_region
    _
  $region33: #{encoder_image_aggr.3} parent=0 // pred_fallthru
    _
  // Predicated region
  $region34: #{encoder_image_aggr.3} parent=0 // pred_check
    _
  $region35: #{encoder_image_aggr.3} parent=0 // pred_check_branch
    %326 = sbr.rel (0) target = $region37
  $region36: #{encoder_image_aggr.3} parent=0 // pred_region
    _
  $region37: #{encoder_image_aggr.3} parent=0 // pred_fallthru
    _

</llo_original>
